<compile_context>
chip_gen: v7x
topology: tpu7x:2x2x1
jax: 0.10.0
libtpu: 0.0.40
codegen_flags: <defaults>
</compile_context>

<pallas_src>
import jax
import jax.numpy as jnp
from jax.experimental import pallas as pl
from jax.experimental.pallas import tpu as pltpu

EPS = 1e-5


def _relu_conv1x1_bn_kernel(x_ref, w_ref, gamma_ref, beta_ref, o_ref):
    # x_ref:     [Cin, P]        (P = N*H*W; full array, shared by every grid step)
    # w_ref:     [Cout_blk, Cin] (this grid step's slice of output channels)
    # gamma_ref: [Cout_blk, 1]
    # beta_ref:  [Cout_blk, 1]
    # o_ref:     [Cout_blk, P]
    x = jnp.maximum(x_ref[...], 0.0)                                    # ReLU (VPU)
    y = jnp.dot(w_ref[...], x, preferred_element_type=jnp.float32)      # 1x1 conv (MXU): [Cout_blk, P]

    # BatchNorm2d training-mode stats per output channel, over all P pixels.
    # One pass: sum and sum-of-squares, then fold BN affine into scale/shift.
    inv_p = 1.0 / y.shape[-1]
    mean = jnp.sum(y, axis=-1, keepdims=True) * inv_p                   # [Cout_blk, 1]
    ex2 = jnp.sum(y * y, axis=-1, keepdims=True) * inv_p                # [Cout_blk, 1]
    var = jnp.maximum(ex2 - mean * mean, 0.0)                           # biased variance
    scale = gamma_ref[...] * jax.lax.rsqrt(var + EPS)                   # [Cout_blk, 1]
    shift = beta_ref[...] - mean * scale                                # [Cout_blk, 1]
    o_ref[...] = (y * scale + shift).astype(o_ref.dtype)


def relu_conv1x1_bn(x_nchw, weight, gamma, beta):
    """
    x_nchw: [N, Cin, H, W] float32
    weight: [Cout, Cin]    float32   (PyTorch conv weight [Cout, Cin, 1, 1] squeezed)
    gamma, beta: [Cout]    float32
    returns: [N, Cout, H, W] float32
    """
    N, Cin, H, W = x_nchw.shape
    Cout = weight.shape[0]
    P = N * H * W

    # [Cin, P] view. For N == 1 this is a free contiguous reshape (no transpose).
    if N == 1:
        x_mat = x_nchw.reshape(Cin, P)
    else:
        x_mat = jnp.transpose(x_nchw, (1, 0, 2, 3)).reshape(Cin, P)

    gamma2 = gamma.reshape(Cout, 1)
    beta2 = beta.reshape(Cout, 1)

    # Split Cout across 2 grid steps (v7x: one per TensorCore). Split along the
    # sublane axis so stores stay clean; fall back to a single block if it doesn't
    # divide evenly into sublane-aligned halves.
    nblk = 2 if (Cout % 2 == 0 and (Cout // 2) % 8 == 0) else 1
    cb = Cout // nblk

    out_mat = pl.pallas_call(
        _relu_conv1x1_bn_kernel,
        out_shape=jax.ShapeDtypeStruct((Cout, P), jnp.float32),
        grid=(nblk,),
        in_specs=[
            pl.BlockSpec((Cin, P), lambda i: (0, 0)),     # x: same block every step (no re-DMA)
            pl.BlockSpec((cb, Cin), lambda i: (i, 0)),    # weight slice
            pl.BlockSpec((cb, 1), lambda i: (i, 0)),      # gamma slice
            pl.BlockSpec((cb, 1), lambda i: (i, 0)),      # beta slice
        ],
        out_specs=pl.BlockSpec((cb, P), lambda i: (i, 0)),
        compiler_params=pltpu.CompilerParams(
            dimension_semantics=("parallel",),
        ),
    )(x_mat, weight, gamma2, beta2)

    # [Cout, P] -> NCHW. For N == 1 this is again a free reshape.
    if N == 1:
        return out_mat.reshape(1, Cout, H, W)
    return jnp.transpose(out_mat.reshape(Cout, N, H, W), (1, 0, 2, 3))


def _reference(x_nchw, weight, gamma, beta):
    # Pure-JAX reference for sanity check (matches PyTorch BN training mode).
    x = jnp.maximum(x_nchw, 0.0)
    y = jnp.einsum("nchw,oc->nohw", x, weight)
    mean = jnp.mean(y, axis=(0, 2, 3), keepdims=True)
    var = jnp.mean((y - mean) ** 2, axis=(0, 2, 3), keepdims=True)
    return (y - mean) * jax.lax.rsqrt(var + EPS) * gamma[None, :, None, None] + beta[None, :, None, None]


if __name__ == "__main__":
    key = jax.random.PRNGKey(0)
    k_x, k_w, k_g, k_b = jax.random.split(key, 4)

    N, Cin, H, W = 1, 1056, 7, 7   # matches densenet201 layer shapes
    Cout = 128

    x = jax.random.normal(k_x, (N, Cin, H, W), dtype=jnp.float32)
    weight = jax.random.normal(k_w, (Cout, Cin), dtype=jnp.float32) * 0.02
    gamma = 1.0 + 0.1 * jax.random.normal(k_g, (Cout,), dtype=jnp.float32)
    beta = 0.1 * jax.random.normal(k_b, (Cout,), dtype=jnp.float32)

    out = relu_conv1x1_bn(x, weight, gamma, beta)
    out = jax.block_until_ready(out)

    ref = jax.block_until_ready(_reference(x, weight, gamma, beta))
    assert out.shape == (N, Cout, H, W)
    assert jnp.allclose(out, ref, atol=1e-4, rtol=1e-4)

    # TODO(synk): PyTorch training-mode BN also updates running_mean/running_var;
    # those buffers are not produced here (not part of the forward output).

    print("KERNEL_OK")
</pallas_src>

<mosaic_0001>
module attributes {stable_mosaic.version = 11 : i64} {
  func.func @_relu_conv1x1_bn_kernel(%arg0: i32, %arg1: memref<1056x49xf32, #tpu.memory_space<vmem>>, %arg2: memref<64x1056xf32, #tpu.memory_space<vmem>>, %arg3: memref<64x1xf32, #tpu.memory_space<vmem>>, %arg4: memref<64x1xf32, #tpu.memory_space<vmem>>, %arg5: memref<64x49xf32, #tpu.memory_space<vmem>>) attributes {dimension_semantics = [#tpu.dimension_semantics<parallel>], iteration_bounds = array<i64: 2>, scalar_prefetch = 0 : i64, scratch_operands = 0 : i64, tpu.core_type = #tpu.core_type<tc>, window_params = [{pipeline_mode = #tpu.pipeline_mode<synchronous>, transform_indices = @transform_0, window_bounds = array<i64: 1056, 49>}, {transform_indices = @transform_1, window_bounds = array<i64: 64, 1056>}, {transform_indices = @transform_2, window_bounds = array<i64: 64, 1>}, {transform_indices = @transform_3, window_bounds = array<i64: 64, 1>}, {transform_indices = @transform_4, window_bounds = array<i64: 64, 49>}]} {
    %c0 = arith.constant 0 : index
    %c0_0 = arith.constant 0 : index
    %0 = vector.load %arg1[%c0, %c0_0] : memref<1056x49xf32, #tpu.memory_space<vmem>>, vector<1056x49xf32>
    %cst = arith.constant 0.000000e+00 : f32
    %1 = vector.broadcast %cst : f32 to vector<1056x49xf32>
    %2 = arith.maximumf %0, %1 : vector<1056x49xf32>
    %c0_1 = arith.constant 0 : index
    %c0_2 = arith.constant 0 : index
    %3 = vector.load %arg2[%c0_1, %c0_2] : memref<64x1056xf32, #tpu.memory_space<vmem>>, vector<64x1056xf32>
    %cst_3 = arith.constant dense<0.000000e+00> : vector<64x49xf32>
    %4 = tpu.matmul %3, %2, %cst_3 {dimension_numbers = #tpu.dot_dimension_numbers<[1], [0], [0], [1], [0, 0, 1, 1], [], []>} : vector<64x1056xf32>, vector<1056x49xf32>, vector<64x49xf32> -> vector<64x49xf32>
    %cst_4 = arith.constant dense<0.000000e+00> : vector<64xf32>
    %5 = vector.multi_reduction <add>, %4, %cst_4 [1] : vector<64x49xf32> to vector<64xf32>
    %6 = vector.shape_cast %5 : vector<64xf32> to vector<64x1xf32>
    %cst_5 = arith.constant 0.0204081628 : f32
    %7 = vector.broadcast %cst_5 : f32 to vector<64x1xf32>
    %8 = arith.mulf %6, %7 : vector<64x1xf32>
    %9 = arith.mulf %4, %4 : vector<64x49xf32>
    %cst_6 = arith.constant dense<0.000000e+00> : vector<64xf32>
    %10 = vector.multi_reduction <add>, %9, %cst_6 [1] : vector<64x49xf32> to vector<64xf32>
    %11 = vector.shape_cast %10 : vector<64xf32> to vector<64x1xf32>
    %cst_7 = arith.constant 0.0204081628 : f32
    %12 = vector.broadcast %cst_7 : f32 to vector<64x1xf32>
    %13 = arith.mulf %11, %12 : vector<64x1xf32>
    %14 = arith.mulf %8, %8 : vector<64x1xf32>
    %15 = arith.subf %13, %14 : vector<64x1xf32>
    %cst_8 = arith.constant 0.000000e+00 : f32
    %16 = vector.broadcast %cst_8 : f32 to vector<64x1xf32>
    %17 = arith.maximumf %15, %16 : vector<64x1xf32>
    %c0_9 = arith.constant 0 : index
    %c0_10 = arith.constant 0 : index
    %18 = vector.load %arg3[%c0_9, %c0_10] : memref<64x1xf32, #tpu.memory_space<vmem>>, vector<64x1xf32>
    %cst_11 = arith.constant 9.99999974E-6 : f32
    %19 = vector.broadcast %cst_11 : f32 to vector<64x1xf32>
    %20 = arith.addf %17, %19 : vector<64x1xf32>
    %21 = math.rsqrt %20 : vector<64x1xf32>
    %22 = arith.mulf %18, %21 : vector<64x1xf32>
    %c0_12 = arith.constant 0 : index
    %c0_13 = arith.constant 0 : index
    %23 = vector.load %arg4[%c0_12, %c0_13] : memref<64x1xf32, #tpu.memory_space<vmem>>, vector<64x1xf32>
    %24 = arith.mulf %8, %22 : vector<64x1xf32>
    %25 = arith.subf %23, %24 : vector<64x1xf32>
    %26 = vector.broadcast %22 : vector<64x1xf32> to vector<64x49xf32>
    %27 = arith.mulf %4, %26 : vector<64x49xf32>
    %28 = vector.broadcast %25 : vector<64x1xf32> to vector<64x49xf32>
    %29 = arith.addf %27, %28 : vector<64x49xf32>
    %c0_14 = arith.constant 0 : index
    %c0_15 = arith.constant 0 : index
    %30 = vector.load %arg5[%c0_14, %c0_15] : memref<64x49xf32, #tpu.memory_space<vmem>>, vector<64x49xf32>
    tpu.vector_store %arg5[%c0_14, %c0_15], %29 {strides = array<i32>} : memref<64x49xf32, #tpu.memory_space<vmem>>, vector<64x49xf32>,
    return
  }
  func.func @transform_0(%arg0: i32) -> (i32, i32) {
    %c0_i32 = arith.constant 0 : i32
    %c0_i32_0 = arith.constant 0 : i32
    %c0_i32_1 = arith.constant 0 : i32
    return %c0_i32, %c0_i32_0 : i32, i32
  }
  func.func @transform_1(%arg0: i32) -> (i32, i32) {
    %c0_i32 = arith.constant 0 : i32
    %c0_i32_0 = arith.constant 0 : i32
    return %arg0, %c0_i32 : i32, i32
  }
  func.func @transform_2(%arg0: i32) -> (i32, i32) {
    %c0_i32 = arith.constant 0 : i32
    %c0_i32_0 = arith.constant 0 : i32
    return %arg0, %c0_i32 : i32, i32
  }
  func.func @transform_3(%arg0: i32) -> (i32, i32) {
    %c0_i32 = arith.constant 0 : i32
    %c0_i32_0 = arith.constant 0 : i32
    return %arg0, %c0_i32 : i32, i32
  }
  func.func @transform_4(%arg0: i32) -> (i32, i32) {
    %c0_i32 = arith.constant 0 : i32
    %c0_i32_0 = arith.constant 0 : i32
    return %arg0, %c0_i32 : i32, i32
  }
}

</mosaic_0001>

<llo_original>
// kernel: tpu_custom_call.1
$region0: #{tpu_custom_call.1}
  #allocation0 [shape = 'u32[]', space=smem, size = 0x4, offset = 0x4, fixed_abs, tag = 'smem constant byte address 0x4 - core index']
  #allocation1 [shape = 'u32[144,128]{1,0:T(1,128)}', space=vmem, size = 0x12000, scoped, tag = 'internal scratch']
  %s0 = inlined_call_operand.vmem [shape: f32[1056,49], index: 0, kind: input, shape index: {}]
  %s1 = inlined_call_operand.vmem [shape: f32[128,1056], index: 1, kind: input, shape index: {}]
  %s2 = inlined_call_operand.vmem [shape: f32[128,1], index: 2, kind: input, shape index: {}]
  %s3 = inlined_call_operand.vmem [shape: f32[128,1], index: 3, kind: input, shape index: {}]
  %s4 = inlined_call_operand.vmem [shape: f32[128,49], index: 4, kind: output, shape index: {}]
  %s5 = sld [smem:[#allocation0]]
  $region49: #{tpu_custom_call.1} parent=0
    _
  %s7 = ssub.s32 1, %s5
  %s8 = scalar_select 0, %s7, %s5
  loop: start=0, step=1, limit=4
  $region2: #{tpu_custom_call.1} parent=0 // loop_pre_header
    _
  $region3: #{tpu_custom_call.1} parent=0 // loop_header
    %s10 = sphi 0, %s14
    %p11 = scmp.ge.s32.totalorder %s10, 4
    %s18 = sphi 0, %s18
    %s20 = sphi 0, %s18
    %s21 = sphi 0, %s20
    %s35 = sphi 0, %s21
    %s41 = sphi 0, %s43
    %s44 = sphi 0, %s41
    %s45 = sphi 0, %s44
    %s61 = sphi 0, %s45
    %s67 = sphi 0, %s69
    %s70 = sphi 0, %s67
    %s71 = sphi 0, %s70
    %s87 = sphi 0, %s71
    %s93 = sphi 0, %s95
    %s96 = sphi 0, %s93
    %s97 = sphi 0, %s96
    %s113 = sphi 0, %s97
    %s119 = sphi 0, %s121
    %s122 = sphi 0, %s119
    %s123 = sphi 0, %s122
    %s139 = sphi 0, %s123
  $region4: #{tpu_custom_call.1} parent=0 // loop_header_branch
    %13 = sbr.rel (%p11) target = $region8
  $region5: #{tpu_custom_call.1} parent=0 // loop_body
    %s15 = ssub.s32 %s10, 1
    %s16 = ssub.s32 %s10, 2
    %s17 = sadd.s32 %s10, 1
    %s19 = sadd.s32 %s18, 1
    %p22 = scmp.eq.s32.totalorder %s10, 1
    %p23 = scmp.ne.s32.totalorder %s18, %s20
    %p24 = scmp.eq.s32.totalorder %s10, 0
    %p25 = por %p23, %p24
    %p26 = scmp.ne.s32.totalorder %s18, %s20
    %p27 = scmp.eq.s32.totalorder %s15, 1
    %p28 = por %p26, %p27
    %p29 = scmp.ne.s32.totalorder %s20, %s21
    %p30 = scmp.eq.s32.totalorder %s15, 0
    %p31 = por %p29, %p30
    %p32 = scmp.ne.s32.totalorder %s20, %s21
    %p33 = scmp.eq.s32.totalorder %s16, 1
    %p34 = por %p32, %p33
    %p36 = scmp.ne.s32.totalorder %s21, %s35
    %p37 = scmp.eq.s32.totalorder %s16, 0
    %p38 = por %p36, %p37
    %s39 = ssub.s32 %s10, %s17
    %p40 = scmp.eq.s32.totalorder %s39, 0
    %s42 = sadd.s32 %s41, 1
    %s43 = scalar_select %p40, %s41, %s42
    %p46 = pneg %p40
    %p47 = scmp.eq.s32.totalorder %s10, 1
    %p48 = por %p46, %p47
    %p49 = scmp.ne.s32.totalorder %s41, %s44
    %p50 = scmp.eq.s32.totalorder %s10, 0
    %p51 = por %p49, %p50
    %p52 = scmp.ne.s32.totalorder %s41, %s44
    %p53 = scmp.eq.s32.totalorder %s15, 1
    %p54 = por %p52, %p53
    %p55 = scmp.ne.s32.totalorder %s44, %s45
    %p56 = scmp.eq.s32.totalorder %s15, 0
    %p57 = por %p55, %p56
    %p58 = scmp.ne.s32.totalorder %s44, %s45
    %p59 = scmp.eq.s32.totalorder %s16, 1
    %p60 = por %p58, %p59
    %p62 = scmp.ne.s32.totalorder %s45, %s61
    %p63 = scmp.eq.s32.totalorder %s16, 0
    %p64 = por %p62, %p63
    %s65 = ssub.s32 %s10, %s17
    %p66 = scmp.eq.s32.totalorder %s65, 0
    %s68 = sadd.s32 %s67, 1
    %s69 = scalar_select %p66, %s67, %s68
    %p72 = pneg %p66
    %p73 = scmp.eq.s32.totalorder %s10, 1
    %p74 = por %p72, %p73
    %p75 = scmp.ne.s32.totalorder %s67, %s70
    %p76 = scmp.eq.s32.totalorder %s10, 0
    %p77 = por %p75, %p76
    %p78 = scmp.ne.s32.totalorder %s67, %s70
    %p79 = scmp.eq.s32.totalorder %s15, 1
    %p80 = por %p78, %p79
    %p81 = scmp.ne.s32.totalorder %s70, %s71
    %p82 = scmp.eq.s32.totalorder %s15, 0
    %p83 = por %p81, %p82
    %p84 = scmp.ne.s32.totalorder %s70, %s71
    %p85 = scmp.eq.s32.totalorder %s16, 1
    %p86 = por %p84, %p85
    %p88 = scmp.ne.s32.totalorder %s71, %s87
    %p89 = scmp.eq.s32.totalorder %s16, 0
    %p90 = por %p88, %p89
    %s91 = ssub.s32 %s10, %s17
    %p92 = scmp.eq.s32.totalorder %s91, 0
    %s94 = sadd.s32 %s93, 1
    %s95 = scalar_select %p92, %s93, %s94
    %p98 = pneg %p92
    %p99 = scmp.eq.s32.totalorder %s10, 1
    %p100 = por %p98, %p99
    %p101 = scmp.ne.s32.totalorder %s93, %s96
    %p102 = scmp.eq.s32.totalorder %s10, 0
    %p103 = por %p101, %p102
    %p104 = scmp.ne.s32.totalorder %s93, %s96
    %p105 = scmp.eq.s32.totalorder %s15, 1
    %p106 = por %p104, %p105
    %p107 = scmp.ne.s32.totalorder %s96, %s97
    %p108 = scmp.eq.s32.totalorder %s15, 0
    %p109 = por %p107, %p108
    %p110 = scmp.ne.s32.totalorder %s96, %s97
    %p111 = scmp.eq.s32.totalorder %s16, 1
    %p112 = por %p110, %p111
    %p114 = scmp.ne.s32.totalorder %s97, %s113
    %p115 = scmp.eq.s32.totalorder %s16, 0
    %p116 = por %p114, %p115
    %s117 = ssub.s32 %s10, %s17
    %p118 = scmp.eq.s32.totalorder %s117, 0
    %s120 = sadd.s32 %s119, 1
    %s121 = scalar_select %p118, %s119, %s120
    %p124 = pneg %p118
    %p125 = scmp.eq.s32.totalorder %s10, 1
    %p126 = por %p124, %p125
    %p127 = scmp.ne.s32.totalorder %s119, %s122
    %p128 = scmp.eq.s32.totalorder %s10, 0
    %p129 = por %p127, %p128
    %p130 = scmp.ne.s32.totalorder %s119, %s122
    %p131 = scmp.eq.s32.totalorder %s15, 1
    %p132 = por %p130, %p131
    %p133 = scmp.ne.s32.totalorder %s122, %s123
    %p134 = scmp.eq.s32.totalorder %s15, 0
    %p135 = por %p133, %p134
    %p136 = scmp.ne.s32.totalorder %s122, %s123
    %p137 = scmp.eq.s32.totalorder %s16, 1
    %p138 = por %p136, %p137
    %p140 = scmp.ne.s32.totalorder %s123, %s139
    %p141 = scmp.eq.s32.totalorder %s16, 0
    %p142 = por %p140, %p141
    %p143 = scmp.le.s32.totalorder 1, %s10
    %p144 = scmp.lt.s32.totalorder %s10, 3
    %p145 = pnand %p143, %p144
    %p146 = pneg %p145
    // Predicated region
    $region9: #{tpu_custom_call.1} parent=5 // pred_check
      _
    $region10: #{tpu_custom_call.1} parent=5 // pred_check_branch
      %148 = sbr.rel (%p145) target = $region12
    $region11: #{tpu_custom_call.1} parent=5 // pred_region
      %s149 = ssub.s32 %s10, 1
      // Predicated region
      $region13: #{tpu_custom_call.1} parent=11 // pred_check
        %p150 = pneg %p31
      $region14: #{tpu_custom_call.1} parent=11 // pred_check_branch
        %152 = sbr.rel (%p150) target = $region16
      $region15: #{tpu_custom_call.1} parent=11 // pred_region
        _
      $region16: #{tpu_custom_call.1} parent=11 // pred_fallthru
        _
    $region12: #{tpu_custom_call.1} parent=5 // pred_fallthru
      _
    %p153 = scmp.lt.s32.totalorder %s10, 2
    // Predicated region
    $region17: #{tpu_custom_call.1} parent=5 // pred_check
      %p154 = pneg %p153
    $region18: #{tpu_custom_call.1} parent=5 // pred_check_branch
      %156 = sbr.rel (%p154) target = $region20
    $region19: #{tpu_custom_call.1} parent=5 // pred_region
      // Predicated region
      $region21: #{tpu_custom_call.1} parent=19 // pred_check
        %p157 = pneg %p51
      $region22: #{tpu_custom_call.1} parent=19 // pred_check_branch
        %159 = sbr.rel (%p157) target = $region24
      $region23: #{tpu_custom_call.1} parent=19 // pred_region
        %s160 = smul.u32 8, %s10
        %p161 = scmp.lt.s32.totalorder %s160, 15
        %s162 = scalar_select %p161, %s160, 15
        %s163 = smul.addr %s162, 9
        %s164 = smul.addr %s163, 8
        %s165 = scalar_lea.vmem %s1, %s164
        %s166 = smul.u32 8, %s10
      $region24: #{tpu_custom_call.1} parent=19 // pred_fallthru
        _
      // Predicated region
      $region25: #{tpu_custom_call.1} parent=19 // pred_check
        %p167 = pneg %p77
      $region26: #{tpu_custom_call.1} parent=19 // pred_check_branch
        %169 = sbr.rel (%p167) target = $region28
      $region27: #{tpu_custom_call.1} parent=19 // pred_region
        %s170 = smul.u32 8, %s10
        %p171 = scmp.lt.s32.totalorder %s170, 15
        %s172 = scalar_select %p171, %s170, 15
        %s173 = smul.addr %s172, 8
        %s174 = scalar_lea.vmem %s2, %s173
        %s175 = smul.u32 8, %s10
      $region28: #{tpu_custom_call.1} parent=19 // pred_fallthru
        _
      // Predicated region
      $region29: #{tpu_custom_call.1} parent=19 // pred_check
        %p176 = pneg %p103
      $region30: #{tpu_custom_call.1} parent=19 // pred_check_branch
        %178 = sbr.rel (%p176) target = $region32
      $region31: #{tpu_custom_call.1} parent=19 // pred_region
        %s179 = smul.u32 8, %s10
        %p180 = scmp.lt.s32.totalorder %s179, 15
        %s181 = scalar_select %p180, %s179, 15
        %s182 = smul.addr %s181, 8
        %s183 = scalar_lea.vmem %s3, %s182
        %s184 = smul.u32 8, %s10
      $region32: #{tpu_custom_call.1} parent=19 // pred_fallthru
        _
    $region20: #{tpu_custom_call.1} parent=5 // pred_fallthru
      _
    %p185 = scmp.le.s32.totalorder 1, %s10
    %p186 = scmp.lt.s32.totalorder %s10, 3
    %p187 = pnand %p185, %p186
    %p188 = pneg %p187
    // Predicated region
    $region33: #{tpu_custom_call.1} parent=5 // pred_check
      _
    $region34: #{tpu_custom_call.1} parent=5 // pred_check_branch
      %190 = sbr.rel (%p187) target = $region36
    $region35: #{tpu_custom_call.1} parent=5 // pred_region
      %s191 = ssub.s32 %s10, 1
      %p192 = pneg %p31
      %p193 = pneg %p28
      %s194 = smul.u32 8, %s15
      %p195 = scmp.lt.s32.totalorder %s194, 15
      %s196 = scalar_select %p195, %s194, 15
      %s197 = smul.addr %s196, 9
      %s198 = smul.addr %s197, 8
      %s199 = scalar_lea.vmem %s1, %s198
      %p200 = pneg %p57
      %p201 = pneg %p54
      %s202 = smul.u32 8, %s15
      %p203 = scmp.lt.s32.totalorder %s202, 15
      %s204 = scalar_select %p203, %s202, 15
      %s205 = smul.addr %s204, 8
      %s206 = scalar_lea.vmem %s2, %s205
      %p207 = pneg %p83
      %p208 = pneg %p80
      %s209 = smul.u32 8, %s15
      %p210 = scmp.lt.s32.totalorder %s209, 15
      %s211 = scalar_select %p210, %s209, 15
      %s212 = smul.addr %s211, 8
      %s213 = scalar_lea.vmem %s3, %s212
      %p214 = pneg %p109
      %p215 = pneg %p106
      %p216 = pneg %p135
      %p217 = pneg %p132
      %s218 = smul.u32 8, %s15
      %p219 = scmp.lt.s32.totalorder %s218, 15
      %s220 = scalar_select %p219, %s218, 15
      %s221 = smul.addr %s220, 8
      %s222 = scalar_lea.vmem %s4, %s221
      %s223 = smul.u32 8, %s15
      %p224 = scmp.lt.s32.totalorder %s223, 15
      %s225 = scalar_select %p224, %s223, 15
      %s226 = smul.addr %s225, 9
      %s227 = smul.addr %s226, 8
      %s228 = scalar_lea.vmem %s1, %s227
      %s229 = smul.u32 8, %s15
      %s230 = smul.u32 8, %s15
      %p231 = scmp.lt.s32.totalorder %s230, 15
      %s232 = scalar_select %p231, %s230, 15
      %s233 = smul.addr %s232, 8
      %s234 = scalar_lea.vmem %s2, %s233
      %s235 = smul.u32 8, %s15
      %s236 = smul.u32 8, %s15
      %p237 = scmp.lt.s32.totalorder %s236, 15
      %s238 = scalar_select %p237, %s236, 15
      %s239 = smul.addr %s238, 8
      %s240 = scalar_lea.vmem %s3, %s239
      %s241 = smul.u32 8, %s15
      %s242 = smul.u32 8, %s15
      %p243 = scmp.lt.s32.totalorder %s242, 15
      %s244 = scalar_select %p243, %s242, 15
      %s245 = smul.addr %s244, 8
      %s246 = scalar_lea.vmem %s4, %s245
      %s247 = smul.u32 8, %s15
      %v248 = vld [vmem:[%s0] sm:$0xff]
      %v249 = vld [vmem:[%s0 + $0x8] sm:$0xff]
      %v250 = vld [vmem:[%s0 + $0x10] sm:$0xff]
      %v251 = vld [vmem:[%s0 + $0x18] sm:$0xff]
      %v252 = vld [vmem:[%s0 + $0x20] sm:$0xff]
      %v253 = vld [vmem:[%s0 + $0x28] sm:$0xff]
      %v254 = vld [vmem:[%s0 + $0x30] sm:$0xff]
      %v255 = vld [vmem:[%s0 + $0x38] sm:$0xff]
      %v256 = vld [vmem:[%s0 + $0x40] sm:$0xff]
      %v257 = vld [vmem:[%s0 + $0x48] sm:$0xff]
      %v258 = vld [vmem:[%s0 + $0x50] sm:$0xff]
      %v259 = vld [vmem:[%s0 + $0x58] sm:$0xff]
      %v260 = vld [vmem:[%s0 + $0x60] sm:$0xff]
      %v261 = vld [vmem:[%s0 + $0x68] sm:$0xff]
      %v262 = vld [vmem:[%s0 + $0x70] sm:$0xff]
      %v263 = vld [vmem:[%s0 + $0x78] sm:$0xff]
      %v264 = vld [vmem:[%s0 + $0x80] sm:$0xff]
      %v265 = vld [vmem:[%s0 + $0x88] sm:$0xff]
      %v266 = vld [vmem:[%s0 + $0x90] sm:$0xff]
      %v267 = vld [vmem:[%s0 + $0x98] sm:$0xff]
      %v268 = vld [vmem:[%s0 + $0xa0] sm:$0xff]
      %v269 = vld [vmem:[%s0 + $0xa8] sm:$0xff]
      %v270 = vld [vmem:[%s0 + $0xb0] sm:$0xff]
      %v271 = vld [vmem:[%s0 + $0xb8] sm:$0xff]
      %v272 = vld [vmem:[%s0 + $0xc0] sm:$0xff]
      %v273 = vld [vmem:[%s0 + $0xc8] sm:$0xff]
      %v274 = vld [vmem:[%s0 + $0xd0] sm:$0xff]
      %v275 = vld [vmem:[%s0 + $0xd8] sm:$0xff]
      %v276 = vld [vmem:[%s0 + $0xe0] sm:$0xff]
      %v277 = vld [vmem:[%s0 + $0xe8] sm:$0xff]
      %v278 = vld [vmem:[%s0 + $0xf0] sm:$0xff]
      %v279 = vld [vmem:[%s0 + $0xf8] sm:$0xff]
      %v280 = vld [vmem:[%s0 + $0x100] sm:$0xff]
      %v281 = vld [vmem:[%s0 + $0x108] sm:$0xff]
      %v282 = vld [vmem:[%s0 + $0x110] sm:$0xff]
      %v283 = vld [vmem:[%s0 + $0x118] sm:$0xff]
      %v284 = vld [vmem:[%s0 + $0x120] sm:$0xff]
      %v285 = vld [vmem:[%s0 + $0x128] sm:$0xff]
      %v286 = vld [vmem:[%s0 + $0x130] sm:$0xff]
      %v287 = vld [vmem:[%s0 + $0x138] sm:$0xff]
      %v288 = vld [vmem:[%s0 + $0x140] sm:$0xff]
      %v289 = vld [vmem:[%s0 + $0x148] sm:$0xff]
      %v290 = vld [vmem:[%s0 + $0x150] sm:$0xff]
      %v291 = vld [vmem:[%s0 + $0x158] sm:$0xff]
      %v292 = vld [vmem:[%s0 + $0x160] sm:$0xff]
      %v293 = vld [vmem:[%s0 + $0x168] sm:$0xff]
      %v294 = vld [vmem:[%s0 + $0x170] sm:$0xff]
      %v295 = vld [vmem:[%s0 + $0x178] sm:$0xff]
      %v296 = vld [vmem:[%s0 + $0x180] sm:$0xff]
      %v297 = vld [vmem:[%s0 + $0x188] sm:$0xff]
      %v298 = vld [vmem:[%s0 + $0x190] sm:$0xff]
      %v299 = vld [vmem:[%s0 + $0x198] sm:$0xff]
      %v300 = vld [vmem:[%s0 + $0x1a0] sm:$0xff]
      %v301 = vld [vmem:[%s0 + $0x1a8] sm:$0xff]
      %v302 = vld [vmem:[%s0 + $0x1b0] sm:$0xff]
      %v303 = vld [vmem:[%s0 + $0x1b8] sm:$0xff]
      %v304 = vld [vmem:[%s0 + $0x1c0] sm:$0xff]
      %v305 = vld [vmem:[%s0 + $0x1c8] sm:$0xff]
      %v306 = vld [vmem:[%s0 + $0x1d0] sm:$0xff]
      %v307 = vld [vmem:[%s0 + $0x1d8] sm:$0xff]
      %v308 = vld [vmem:[%s0 + $0x1e0] sm:$0xff]
      %v309 = vld [vmem:[%s0 + $0x1e8] sm:$0xff]
      %v310 = vld [vmem:[%s0 + $0x1f0] sm:$0xff]
      %v311 = vld [vmem:[%s0 + $0x1f8] sm:$0xff]
      %v312 = vld [vmem:[%s0 + $0x200] sm:$0xff]
      %v313 = vld [vmem:[%s0 + $0x208] sm:$0xff]
      %v314 = vld [vmem:[%s0 + $0x210] sm:$0xff]
      %v315 = vld [vmem:[%s0 + $0x218] sm:$0xff]
      %v316 = vld [vmem:[%s0 + $0x220] sm:$0xff]
      %v317 = vld [vmem:[%s0 + $0x228] sm:$0xff]
      %v318 = vld [vmem:[%s0 + $0x230] sm:$0xff]
      %v319 = vld [vmem:[%s0 + $0x238] sm:$0xff]
      %v320 = vld [vmem:[%s0 + $0x240] sm:$0xff]
      %v321 = vld [vmem:[%s0 + $0x248] sm:$0xff]
      %v322 = vld [vmem:[%s0 + $0x250] sm:$0xff]
      %v323 = vld [vmem:[%s0 + $0x258] sm:$0xff]
      %v324 = vld [vmem:[%s0 + $0x260] sm:$0xff]
      %v325 = vld [vmem:[%s0 + $0x268] sm:$0xff]
      %v326 = vld [vmem:[%s0 + $0x270] sm:$0xff]
      %v327 = vld [vmem:[%s0 + $0x278] sm:$0xff]
      %v328 = vld [vmem:[%s0 + $0x280] sm:$0xff]
      %v329 = vld [vmem:[%s0 + $0x288] sm:$0xff]
      %v330 = vld [vmem:[%s0 + $0x290] sm:$0xff]
      %v331 = vld [vmem:[%s0 + $0x298] sm:$0xff]
      %v332 = vld [vmem:[%s0 + $0x2a0] sm:$0xff]
      %v333 = vld [vmem:[%s0 + $0x2a8] sm:$0xff]
      %v334 = vld [vmem:[%s0 + $0x2b0] sm:$0xff]
      %v335 = vld [vmem:[%s0 + $0x2b8] sm:$0xff]
      %v336 = vld [vmem:[%s0 + $0x2c0] sm:$0xff]
      %v337 = vld [vmem:[%s0 + $0x2c8] sm:$0xff]
      %v338 = vld [vmem:[%s0 + $0x2d0] sm:$0xff]
      %v339 = vld [vmem:[%s0 + $0x2d8] sm:$0xff]
      %v340 = vld [vmem:[%s0 + $0x2e0] sm:$0xff]
      %v341 = vld [vmem:[%s0 + $0x2e8] sm:$0xff]
      %v342 = vld [vmem:[%s0 + $0x2f0] sm:$0xff]
      %v343 = vld [vmem:[%s0 + $0x2f8] sm:$0xff]
      %v344 = vld [vmem:[%s0 + $0x300] sm:$0xff]
      %v345 = vld [vmem:[%s0 + $0x308] sm:$0xff]
      %v346 = vld [vmem:[%s0 + $0x310] sm:$0xff]
      %v347 = vld [vmem:[%s0 + $0x318] sm:$0xff]
      %v348 = vld [vmem:[%s0 + $0x320] sm:$0xff]
      %v349 = vld [vmem:[%s0 + $0x328] sm:$0xff]
      %v350 = vld [vmem:[%s0 + $0x330] sm:$0xff]
      %v351 = vld [vmem:[%s0 + $0x338] sm:$0xff]
      %v352 = vld [vmem:[%s0 + $0x340] sm:$0xff]
      %v353 = vld [vmem:[%s0 + $0x348] sm:$0xff]
      %v354 = vld [vmem:[%s0 + $0x350] sm:$0xff]
      %v355 = vld [vmem:[%s0 + $0x358] sm:$0xff]
      %v356 = vld [vmem:[%s0 + $0x360] sm:$0xff]
      %v357 = vld [vmem:[%s0 + $0x368] sm:$0xff]
      %v358 = vld [vmem:[%s0 + $0x370] sm:$0xff]
      %v359 = vld [vmem:[%s0 + $0x378] sm:$0xff]
      %v360 = vld [vmem:[%s0 + $0x380] sm:$0xff]
      %v361 = vld [vmem:[%s0 + $0x388] sm:$0xff]
      %v362 = vld [vmem:[%s0 + $0x390] sm:$0xff]
      %v363 = vld [vmem:[%s0 + $0x398] sm:$0xff]
      %v364 = vld [vmem:[%s0 + $0x3a0] sm:$0xff]
      %v365 = vld [vmem:[%s0 + $0x3a8] sm:$0xff]
      %v366 = vld [vmem:[%s0 + $0x3b0] sm:$0xff]
      %v367 = vld [vmem:[%s0 + $0x3b8] sm:$0xff]
      %v368 = vld [vmem:[%s0 + $0x3c0] sm:$0xff]
      %v369 = vld [vmem:[%s0 + $0x3c8] sm:$0xff]
      %v370 = vld [vmem:[%s0 + $0x3d0] sm:$0xff]
      %v371 = vld [vmem:[%s0 + $0x3d8] sm:$0xff]
      %v372 = vld [vmem:[%s0 + $0x3e0] sm:$0xff]
      %v373 = vld [vmem:[%s0 + $0x3e8] sm:$0xff]
      %v374 = vld [vmem:[%s0 + $0x3f0] sm:$0xff]
      %v375 = vld [vmem:[%s0 + $0x3f8] sm:$0xff]
      %v376 = vld [vmem:[%s0 + $0x400] sm:$0xff]
      %v377 = vld [vmem:[%s0 + $0x408] sm:$0xff]
      %v378 = vld [vmem:[%s0 + $0x410] sm:$0xff]
      %v379 = vld [vmem:[%s0 + $0x418] sm:$0xff]
      %v380 = vmax.f32 %v248, 0.0
      %v381 = vmax.f32 %v249, 0.0
      %v382 = vmax.f32 %v250, 0.0
      %v383 = vmax.f32 %v251, 0.0
      %v384 = vmax.f32 %v252, 0.0
      %v385 = vmax.f32 %v253, 0.0
      %v386 = vmax.f32 %v254, 0.0
      %v387 = vmax.f32 %v255, 0.0
      %v388 = vmax.f32 %v256, 0.0
      %v389 = vmax.f32 %v257, 0.0
      %v390 = vmax.f32 %v258, 0.0
      %v391 = vmax.f32 %v259, 0.0
      %v392 = vmax.f32 %v260, 0.0
      %v393 = vmax.f32 %v261, 0.0
      %v394 = vmax.f32 %v262, 0.0
      %v395 = vmax.f32 %v263, 0.0
      %v396 = vmax.f32 %v264, 0.0
      %v397 = vmax.f32 %v265, 0.0
      %v398 = vmax.f32 %v266, 0.0
      %v399 = vmax.f32 %v267, 0.0
      %v400 = vmax.f32 %v268, 0.0
      %v401 = vmax.f32 %v269, 0.0
      %v402 = vmax.f32 %v270, 0.0
      %v403 = vmax.f32 %v271, 0.0
      %v404 = vmax.f32 %v272, 0.0
      %v405 = vmax.f32 %v273, 0.0
      %v406 = vmax.f32 %v274, 0.0
      %v407 = vmax.f32 %v275, 0.0
      %v408 = vmax.f32 %v276, 0.0
      %v409 = vmax.f32 %v277, 0.0
      %v410 = vmax.f32 %v278, 0.0
      %v411 = vmax.f32 %v279, 0.0
      %v412 = vmax.f32 %v280, 0.0
      %v413 = vmax.f32 %v281, 0.0
      %v414 = vmax.f32 %v282, 0.0
      %v415 = vmax.f32 %v283, 0.0
      %v416 = vmax.f32 %v284, 0.0
      %v417 = vmax.f32 %v285, 0.0
      %v418 = vmax.f32 %v286, 0.0
      %v419 = vmax.f32 %v287, 0.0
      %v420 = vmax.f32 %v288, 0.0
      %v421 = vmax.f32 %v289, 0.0
      %v422 = vmax.f32 %v290, 0.0
      %v423 = vmax.f32 %v291, 0.0
      %v424 = vmax.f32 %v292, 0.0
      %v425 = vmax.f32 %v293, 0.0
      %v426 = vmax.f32 %v294, 0.0
      %v427 = vmax.f32 %v295, 0.0
      %v428 = vmax.f32 %v296, 0.0
      %v429 = vmax.f32 %v297, 0.0
      %v430 = vmax.f32 %v298, 0.0
      %v431 = vmax.f32 %v299, 0.0
      %v432 = vmax.f32 %v300, 0.0
      %v433 = vmax.f32 %v301, 0.0
      %v434 = vmax.f32 %v302, 0.0
      %v435 = vmax.f32 %v303, 0.0
      %v436 = vmax.f32 %v304, 0.0
      %v437 = vmax.f32 %v305, 0.0
      %v438 = vmax.f32 %v306, 0.0
      %v439 = vmax.f32 %v307, 0.0
      %v440 = vmax.f32 %v308, 0.0
      %v441 = vmax.f32 %v309, 0.0
      %v442 = vmax.f32 %v310, 0.0
      %v443 = vmax.f32 %v311, 0.0
      %v444 = vmax.f32 %v312, 0.0
      %v445 = vmax.f32 %v313, 0.0
      %v446 = vmax.f32 %v314, 0.0
      %v447 = vmax.f32 %v315, 0.0
      %v448 = vmax.f32 %v316, 0.0
      %v449 = vmax.f32 %v317, 0.0
      %v450 = vmax.f32 %v318, 0.0
      %v451 = vmax.f32 %v319, 0.0
      %v452 = vmax.f32 %v320, 0.0
      %v453 = vmax.f32 %v321, 0.0
      %v454 = vmax.f32 %v322, 0.0
      %v455 = vmax.f32 %v323, 0.0
      %v456 = vmax.f32 %v324, 0.0
      %v457 = vmax.f32 %v325, 0.0
      %v458 = vmax.f32 %v326, 0.0
      %v459 = vmax.f32 %v327, 0.0
      %v460 = vmax.f32 %v328, 0.0
      %v461 = vmax.f32 %v329, 0.0
      %v462 = vmax.f32 %v330, 0.0
      %v463 = vmax.f32 %v331, 0.0
      %v464 = vmax.f32 %v332, 0.0
      %v465 = vmax.f32 %v333, 0.0
      %v466 = vmax.f32 %v334, 0.0
      %v467 = vmax.f32 %v335, 0.0
      %v468 = vmax.f32 %v336, 0.0
      %v469 = vmax.f32 %v337, 0.0
      %v470 = vmax.f32 %v338, 0.0
      %v471 = vmax.f32 %v339, 0.0
      %v472 = vmax.f32 %v340, 0.0
      %v473 = vmax.f32 %v341, 0.0
      %v474 = vmax.f32 %v342, 0.0
      %v475 = vmax.f32 %v343, 0.0
      %v476 = vmax.f32 %v344, 0.0
      %v477 = vmax.f32 %v345, 0.0
      %v478 = vmax.f32 %v346, 0.0
      %v479 = vmax.f32 %v347, 0.0
      %v480 = vmax.f32 %v348, 0.0
      %v481 = vmax.f32 %v349, 0.0
      %v482 = vmax.f32 %v350, 0.0
      %v483 = vmax.f32 %v351, 0.0
      %v484 = vmax.f32 %v352, 0.0
      %v485 = vmax.f32 %v353, 0.0
      %v486 = vmax.f32 %v354, 0.0
      %v487 = vmax.f32 %v355, 0.0
      %v488 = vmax.f32 %v356, 0.0
      %v489 = vmax.f32 %v357, 0.0
      %v490 = vmax.f32 %v358, 0.0
      %v491 = vmax.f32 %v359, 0.0
      %v492 = vmax.f32 %v360, 0.0
      %v493 = vmax.f32 %v361, 0.0
      %v494 = vmax.f32 %v362, 0.0
      %v495 = vmax.f32 %v363, 0.0
      %v496 = vmax.f32 %v364, 0.0
      %v497 = vmax.f32 %v365, 0.0
      %v498 = vmax.f32 %v366, 0.0
      %v499 = vmax.f32 %v367, 0.0
      %v500 = vmax.f32 %v368, 0.0
      %v501 = vmax.f32 %v369, 0.0
      %v502 = vmax.f32 %v370, 0.0
      %v503 = vmax.f32 %v371, 0.0
      %v504 = vmax.f32 %v372, 0.0
      %v505 = vmax.f32 %v373, 0.0
      %v506 = vmax.f32 %v374, 0.0
      %v507 = vmax.f32 %v375, 0.0
      %v508 = vmax.f32 %v376, 0.0
      %v509 = vmax.f32 %v377, 0.0
      %v510 = vmax.f32 %v378, 0.0
      %v511 = vmax.f32 %v379, 0.0
      %v512 = vld [vmem:[%s228] sm:$0xff]
      %v513 = vld [vmem:[%s228 + $0x8] sm:$0xff]
      %v514 = vld [vmem:[%s228 + $0x10] sm:$0xff]
      %v515 = vld [vmem:[%s228 + $0x18] sm:$0xff]
      %v516 = vld [vmem:[%s228 + $0x20] sm:$0xff]
      %v517 = vld [vmem:[%s228 + $0x28] sm:$0xff]
      %v518 = vld [vmem:[%s228 + $0x30] sm:$0xff]
      %v519 = vld [vmem:[%s228 + $0x38] sm:$0xff]
      %v520 = vld [vmem:[%s228 + $0x40] sm:$0xff]
      %v521 = vld [vmem:[%s228 + $0x48] sm:$0xff]
      %v522 = vld [vmem:[%s228 + $0x50] sm:$0xff]
      %v523 = vld [vmem:[%s228 + $0x58] sm:$0xff]
      %v524 = vld [vmem:[%s228 + $0x60] sm:$0xff]
      %v525 = vld [vmem:[%s228 + $0x68] sm:$0xff]
      %v526 = vld [vmem:[%s228 + $0x70] sm:$0xff]
      %v527 = vld [vmem:[%s228 + $0x78] sm:$0xff]
      %v528 = vld [vmem:[%s228 + $0x80] sm:$0xff]
      %v529 = vld [vmem:[%s228 + $0x88] sm:$0xff]
      %v530 = vld [vmem:[%s228 + $0x90] sm:$0xff]
      %v531 = vld [vmem:[%s228 + $0x98] sm:$0xff]
      %v532 = vld [vmem:[%s228 + $0xa0] sm:$0xff]
      %v533 = vld [vmem:[%s228 + $0xa8] sm:$0xff]
      %v534 = vld [vmem:[%s228 + $0xb0] sm:$0xff]
      %v535 = vld [vmem:[%s228 + $0xb8] sm:$0xff]
      %v536 = vld [vmem:[%s228 + $0xc0] sm:$0xff]
      %v537 = vld [vmem:[%s228 + $0xc8] sm:$0xff]
      %v538 = vld [vmem:[%s228 + $0xd0] sm:$0xff]
      %v539 = vld [vmem:[%s228 + $0xd8] sm:$0xff]
      %v540 = vld [vmem:[%s228 + $0xe0] sm:$0xff]
      %v541 = vld [vmem:[%s228 + $0xe8] sm:$0xff]
      %v542 = vld [vmem:[%s228 + $0xf0] sm:$0xff]
      %v543 = vld [vmem:[%s228 + $0xf8] sm:$0xff]
      %v544 = vld [vmem:[%s228 + $0x100] sm:$0xff]
      %v545 = vld [vmem:[%s228 + $0x108] sm:$0xff]
      %v546 = vld [vmem:[%s228 + $0x110] sm:$0xff]
      %v547 = vld [vmem:[%s228 + $0x118] sm:$0xff]
      %v548 = vld [vmem:[%s228 + $0x120] sm:$0xff]
      %v549 = vld [vmem:[%s228 + $0x128] sm:$0xff]
      %v550 = vld [vmem:[%s228 + $0x130] sm:$0xff]
      %v551 = vld [vmem:[%s228 + $0x138] sm:$0xff]
      %v552 = vld [vmem:[%s228 + $0x140] sm:$0xff]
      %v553 = vld [vmem:[%s228 + $0x148] sm:$0xff]
      %v554 = vld [vmem:[%s228 + $0x150] sm:$0xff]
      %v555 = vld [vmem:[%s228 + $0x158] sm:$0xff]
      %v556 = vld [vmem:[%s228 + $0x160] sm:$0xff]
      %v557 = vld [vmem:[%s228 + $0x168] sm:$0xff]
      %v558 = vld [vmem:[%s228 + $0x170] sm:$0xff]
      %v559 = vld [vmem:[%s228 + $0x178] sm:$0xff]
      %v560 = vld [vmem:[%s228 + $0x180] sm:$0xff]
      %v561 = vld [vmem:[%s228 + $0x188] sm:$0xff]
      %v562 = vld [vmem:[%s228 + $0x190] sm:$0xff]
      %v563 = vld [vmem:[%s228 + $0x198] sm:$0xff]
      %v564 = vld [vmem:[%s228 + $0x1a0] sm:$0xff]
      %v565 = vld [vmem:[%s228 + $0x1a8] sm:$0xff]
      %v566 = vld [vmem:[%s228 + $0x1b0] sm:$0xff]
      %v567 = vld [vmem:[%s228 + $0x1b8] sm:$0xff]
      %v568 = vld [vmem:[%s228 + $0x1c0] sm:$0xff]
      %v569 = vld [vmem:[%s228 + $0x1c8] sm:$0xff]
      %v570 = vld [vmem:[%s228 + $0x1d0] sm:$0xff]
      %v571 = vld [vmem:[%s228 + $0x1d8] sm:$0xff]
      %v572 = vld [vmem:[%s228 + $0x1e0] sm:$0xff]
      %v573 = vld [vmem:[%s228 + $0x1e8] sm:$0xff]
      %v574 = vld [vmem:[%s228 + $0x1f0] sm:$0xff]
      %v575 = vld [vmem:[%s228 + $0x1f8] sm:$0xff]
      %v576 = vld [vmem:[%s228 + $0x200] sm:$0xff]
      %v577 = vld [vmem:[%s228 + $0x208] sm:$0xff]
      %v578 = vld [vmem:[%s228 + $0x210] sm:$0xff]
      %v579 = vld [vmem:[%s228 + $0x218] sm:$0xff]
      %v580 = vld [vmem:[%s228 + $0x220] sm:$0xff]
      %v581 = vld [vmem:[%s228 + $0x228] sm:$0xff]
      %v582 = vld [vmem:[%s228 + $0x230] sm:$0xff]
      %v583 = vld [vmem:[%s228 + $0x238] sm:$0xff]
      %vm584 = vcmask 261120
      %v586 = vsel %vm584, %v520, 0
      %v589 = vsel %vm584, %v529, 0
      %v592 = vsel %vm584, %v538, 0
      %v595 = vsel %vm584, %v547, 0
      %v598 = vsel %vm584, %v556, 0
      %v601 = vsel %vm584, %v565, 0
      %v604 = vsel %vm584, %v574, 0
      %v607 = vsel %vm584, %v583, 0
      %609 = vmatprep.subr.mxu0 0.0
      %610 = vmatpush1.msra.mxu0 %v380
      %611 = vmatprep.subr.mxu0 0.0
      %612 = vmatpush1.msra.mxu0 %v381
      %613 = vmatprep.subr.mxu0 0.0
      %614 = vmatpush1.msra.mxu0 %v382
      %615 = vmatprep.subr.mxu0 0.0
      %616 = vmatpush1.msra.mxu0 %v383
      %617 = vmatprep.subr.mxu0 0.0
      %618 = vmatpush1.msra.mxu0 %v384
      %619 = vmatprep.subr.mxu0 0.0
      %620 = vmatpush1.msra.mxu0 %v385
      %621 = vmatprep.subr.mxu0 0.0
      %622 = vmatpush1.msra.mxu0 %v386
      %623 = vmatprep.subr.mxu0 0.0
      %624 = vmatpush1.msra.mxu0 %v387
      %625 = vmatprep.subr.mxu0 0.0
      %626 = vmatpush1.msra.mxu0 %v388
      %627 = vmatprep.subr.mxu0 0.0
      %628 = vmatpush1.msra.mxu0 %v389
      %629 = vmatprep.subr.mxu0 0.0
      %630 = vmatpush1.msra.mxu0 %v390
      %631 = vmatprep.subr.mxu0 0.0
      %632 = vmatpush1.msra.mxu0 %v391
      %633 = vmatprep.subr.mxu0 0.0
      %634 = vmatpush1.msra.mxu0 %v392
      %635 = vmatprep.subr.mxu0 0.0
      %636 = vmatpush1.msra.mxu0 %v393
      %637 = vmatprep.subr.mxu0 0.0
      %638 = vmatpush1.msra.mxu0 %v394
      %639 = vmatprep.subr.mxu0 0.0
      %640 = vmatpush1.msra.mxu0 %v395
      %641 = vmatprep.subr.mxu0 0.0
      %642 = vmatpush1.msra.mxu0 %v396
      %643 = vmatprep.subr.mxu0 0.0
      %644 = vmatpush1.msra.mxu0 %v397
      %645 = vmatprep.subr.mxu0 0.0
      %646 = vmatpush1.msra.mxu0 %v398
      %647 = vmatprep.subr.mxu0 0.0
      %648 = vmatpush1.msra.mxu0 %v399
      %649 = vmatprep.subr.mxu0 0.0
      %650 = vmatpush1.msra.mxu0 %v400
      %651 = vmatprep.subr.mxu0 0.0
      %652 = vmatpush1.msra.mxu0 %v401
      %653 = vmatprep.subr.mxu0 0.0
      %654 = vmatpush1.msra.mxu0 %v402
      %655 = vmatprep.subr.mxu0 0.0
      %656 = vmatpush1.msra.mxu0 %v403
      %657 = vmatprep.subr.mxu0 0.0
      %658 = vmatpush1.msra.mxu0 %v404
      %659 = vmatprep.subr.mxu0 0.0
      %660 = vmatpush1.msra.mxu0 %v405
      %661 = vmatprep.subr.mxu0 0.0
      %662 = vmatpush1.msra.mxu0 %v406
      %663 = vmatprep.subr.mxu0 0.0
      %664 = vmatpush1.msra.mxu0 %v407
      %665 = vmatprep.subr.mxu0 0.0
      %666 = vmatpush1.msra.mxu0 %v408
      %667 = vmatprep.subr.mxu0 0.0
      %668 = vmatpush1.msra.mxu0 %v409
      %669 = vmatprep.subr.mxu0 0.0
      %670 = vmatpush1.msra.mxu0 %v410
      %671 = vmatprep.subr.mxu0 0.0
      %672 = vmatpush1.msra.mxu0 %v411
      %673 = vmatprep.mubr.f32.mxu0 %v513
      %674 = vmatmul.mubr.f32.gmra.mrb[0].mxu0 %v512
      %v675 = vpop.f32.mrb[0].mxu0
      %v676 = vadd.f32 0.0, %v675
      %v677 = vpop.f32.mrb[0].mxu0
      %678 = vmatprep.mubr.f32.mxu0 %v522
      %679 = vmatmul.mubr.f32.gmra.mrb[0].mxu0 %v521
      %v680 = vpop.f32.mrb[0].mxu0
      %v681 = vadd.f32 0.0, %v680
      %v682 = vpop.f32.mrb[0].mxu0
      %683 = vmatprep.mubr.f32.mxu0 %v531
      %684 = vmatmul.mubr.f32.gmra.mrb[0].mxu0 %v530
      %v685 = vpop.f32.mrb[0].mxu0
      %v686 = vadd.f32 0.0, %v685
      %v687 = vpop.f32.mrb[0].mxu0
      %688 = vmatprep.mubr.f32.mxu0 %v540
      %689 = vmatmul.mubr.f32.gmra.mrb[0].mxu0 %v539
      %v690 = vpop.f32.mrb[0].mxu0
      %v691 = vadd.f32 0.0, %v690
      %v692 = vpop.f32.mrb[0].mxu0
      %693 = vmatprep.mubr.f32.mxu0 %v549
      %694 = vmatmul.mubr.f32.gmra.mrb[0].mxu0 %v548
      %v695 = vpop.f32.mrb[0].mxu0
      %v696 = vadd.f32 0.0, %v695
      %v697 = vpop.f32.mrb[0].mxu0
      %698 = vmatprep.mubr.f32.mxu0 %v558
      %699 = vmatmul.mubr.f32.gmra.mrb[0].mxu0 %v557
      %v700 = vpop.f32.mrb[0].mxu0
      %v701 = vadd.f32 0.0, %v700
      %v702 = vpop.f32.mrb[0].mxu0
      %703 = vmatprep.mubr.f32.mxu0 %v567
      %704 = vmatmul.mubr.f32.gmra.mrb[0].mxu0 %v566
      %v705 = vpop.f32.mrb[0].mxu0
      %v706 = vadd.f32 0.0, %v705
      %v707 = vpop.f32.mrb[0].mxu0
      %708 = vmatprep.mubr.f32.mxu0 %v576
      %709 = vmatmul.mubr.f32.gmra.mrb[0].mxu0 %v575
      %v710 = vpop.f32.mrb[0].mxu0
      %v711 = vadd.f32 0.0, %v710
      %v712 = vpop.f32.mrb[0].mxu0
      %713 = vdwg.mxu0
      %714 = vmatprep.subr.mxu0 0.0
      %715 = vmatpush1.msra.mxu0 %v412
      %716 = vmatprep.subr.mxu0 0.0
      %717 = vmatpush1.msra.mxu0 %v413
      %718 = vmatprep.subr.mxu0 0.0
      %719 = vmatpush1.msra.mxu0 %v414
      %720 = vmatprep.subr.mxu0 0.0
      %721 = vmatpush1.msra.mxu0 %v415
      %722 = vmatprep.subr.mxu0 0.0
      %723 = vmatpush1.msra.mxu0 %v416
      %724 = vmatprep.subr.mxu0 0.0
      %725 = vmatpush1.msra.mxu0 %v417
      %726 = vmatprep.subr.mxu0 0.0
      %727 = vmatpush1.msra.mxu0 %v418
      %728 = vmatprep.subr.mxu0 0.0
      %729 = vmatpush1.msra.mxu0 %v419
      %730 = vmatprep.subr.mxu0 0.0
      %731 = vmatpush1.msra.mxu0 %v420
      %732 = vmatprep.subr.mxu0 0.0
      %733 = vmatpush1.msra.mxu0 %v421
      %734 = vmatprep.subr.mxu0 0.0
      %735 = vmatpush1.msra.mxu0 %v422
      %736 = vmatprep.subr.mxu0 0.0
      %737 = vmatpush1.msra.mxu0 %v423
      %738 = vmatprep.subr.mxu0 0.0
      %739 = vmatpush1.msra.mxu0 %v424
      %740 = vmatprep.subr.mxu0 0.0
      %741 = vmatpush1.msra.mxu0 %v425
      %742 = vmatprep.subr.mxu0 0.0
      %743 = vmatpush1.msra.mxu0 %v426
      %744 = vmatprep.subr.mxu0 0.0
      %745 = vmatpush1.msra.mxu0 %v427
      %746 = vmatprep.subr.mxu0 0.0
      %747 = vmatpush1.msra.mxu0 %v428
      %748 = vmatprep.subr.mxu0 0.0
      %749 = vmatpush1.msra.mxu0 %v429
      %750 = vmatprep.subr.mxu0 0.0
      %751 = vmatpush1.msra.mxu0 %v430
      %752 = vmatprep.subr.mxu0 0.0
      %753 = vmatpush1.msra.mxu0 %v431
      %754 = vmatprep.subr.mxu0 0.0
      %755 = vmatpush1.msra.mxu0 %v432
      %756 = vmatprep.subr.mxu0 0.0
      %757 = vmatpush1.msra.mxu0 %v433
      %758 = vmatprep.subr.mxu0 0.0
      %759 = vmatpush1.msra.mxu0 %v434
      %760 = vmatprep.subr.mxu0 0.0
      %761 = vmatpush1.msra.mxu0 %v435
      %762 = vmatprep.subr.mxu0 0.0
      %763 = vmatpush1.msra.mxu0 %v436
      %764 = vmatprep.subr.mxu0 0.0
      %765 = vmatpush1.msra.mxu0 %v437
      %766 = vmatprep.subr.mxu0 0.0
      %767 = vmatpush1.msra.mxu0 %v438
      %768 = vmatprep.subr.mxu0 0.0
      %769 = vmatpush1.msra.mxu0 %v439
      %770 = vmatprep.subr.mxu0 0.0
      %771 = vmatpush1.msra.mxu0 %v440
      %772 = vmatprep.subr.mxu0 0.0
      %773 = vmatpush1.msra.mxu0 %v441
      %774 = vmatprep.subr.mxu0 0.0
      %775 = vmatpush1.msra.mxu0 %v442
      %776 = vmatprep.subr.mxu0 0.0
      %777 = vmatpush1.msra.mxu0 %v443
      %778 = vmatprep.mubr.f32.mxu0 %v515
      %779 = vmatmul.mubr.f32.gmra.mrb[0].mxu0 %v514
      %v780 = vpop.f32.mrb[0].mxu0
      %v781 = vadd.f32 %v676, %v780
      %v782 = vpop.f32.mrb[0].mxu0
      %783 = vmatprep.mubr.f32.mxu0 %v524
      %784 = vmatmul.mubr.f32.gmra.mrb[0].mxu0 %v523
      %v785 = vpop.f32.mrb[0].mxu0
      %v786 = vadd.f32 %v681, %v785
      %v787 = vpop.f32.mrb[0].mxu0
      %788 = vmatprep.mubr.f32.mxu0 %v533
      %789 = vmatmul.mubr.f32.gmra.mrb[0].mxu0 %v532
      %v790 = vpop.f32.mrb[0].mxu0
      %v791 = vadd.f32 %v686, %v790
      %v792 = vpop.f32.mrb[0].mxu0
      %793 = vmatprep.mubr.f32.mxu0 %v542
      %794 = vmatmul.mubr.f32.gmra.mrb[0].mxu0 %v541
      %v795 = vpop.f32.mrb[0].mxu0
      %v796 = vadd.f32 %v691, %v795
      %v797 = vpop.f32.mrb[0].mxu0
      %798 = vmatprep.mubr.f32.mxu0 %v551
      %799 = vmatmul.mubr.f32.gmra.mrb[0].mxu0 %v550
      %v800 = vpop.f32.mrb[0].mxu0
      %v801 = vadd.f32 %v696, %v800
      %v802 = vpop.f32.mrb[0].mxu0
      %803 = vmatprep.mubr.f32.mxu0 %v560
      %804 = vmatmul.mubr.f32.gmra.mrb[0].mxu0 %v559
      %v805 = vpop.f32.mrb[0].mxu0
      %v806 = vadd.f32 %v701, %v805
      %v807 = vpop.f32.mrb[0].mxu0
      %808 = vmatprep.mubr.f32.mxu0 %v569
      %809 = vmatmul.mubr.f32.gmra.mrb[0].mxu0 %v568
      %v810 = vpop.f32.mrb[0].mxu0
      %v811 = vadd.f32 %v706, %v810
      %v812 = vpop.f32.mrb[0].mxu0
      %813 = vmatprep.mubr.f32.mxu0 %v578
      %814 = vmatmul.mubr.f32.gmra.mrb[0].mxu0 %v577
      %v815 = vpop.f32.mrb[0].mxu0
      %v816 = vadd.f32 %v711, %v815
      %v817 = vpop.f32.mrb[0].mxu0
      %818 = vdwg.mxu0
      %819 = vmatprep.subr.mxu0 0.0
      %820 = vmatpush1.msra.mxu0 %v444
      %821 = vmatprep.subr.mxu0 0.0
      %822 = vmatpush1.msra.mxu0 %v445
      %823 = vmatprep.subr.mxu0 0.0
      %824 = vmatpush1.msra.mxu0 %v446
      %825 = vmatprep.subr.mxu0 0.0
      %826 = vmatpush1.msra.mxu0 %v447
      %827 = vmatprep.subr.mxu0 0.0
      %828 = vmatpush1.msra.mxu0 %v448
      %829 = vmatprep.subr.mxu0 0.0
      %830 = vmatpush1.msra.mxu0 %v449
      %831 = vmatprep.subr.mxu0 0.0
      %832 = vmatpush1.msra.mxu0 %v450
      %833 = vmatprep.subr.mxu0 0.0
      %834 = vmatpush1.msra.mxu0 %v451
      %835 = vmatprep.subr.mxu0 0.0
      %836 = vmatpush1.msra.mxu0 %v452
      %837 = vmatprep.subr.mxu0 0.0
      %838 = vmatpush1.msra.mxu0 %v453
      %839 = vmatprep.subr.mxu0 0.0
      %840 = vmatpush1.msra.mxu0 %v454
      %841 = vmatprep.subr.mxu0 0.0
      %842 = vmatpush1.msra.mxu0 %v455
      %843 = vmatprep.subr.mxu0 0.0
      %844 = vmatpush1.msra.mxu0 %v456
      %845 = vmatprep.subr.mxu0 0.0
      %846 = vmatpush1.msra.mxu0 %v457
      %847 = vmatprep.subr.mxu0 0.0
      %848 = vmatpush1.msra.mxu0 %v458
      %849 = vmatprep.subr.mxu0 0.0
      %850 = vmatpush1.msra.mxu0 %v459
      %851 = vmatprep.subr.mxu0 0.0
      %852 = vmatpush1.msra.mxu0 %v460
      %853 = vmatprep.subr.mxu0 0.0
      %854 = vmatpush1.msra.mxu0 %v461
      %855 = vmatprep.subr.mxu0 0.0
      %856 = vmatpush1.msra.mxu0 %v462
      %857 = vmatprep.subr.mxu0 0.0
      %858 = vmatpush1.msra.mxu0 %v463
      %859 = vmatprep.subr.mxu0 0.0
      %860 = vmatpush1.msra.mxu0 %v464
      %861 = vmatprep.subr.mxu0 0.0
      %862 = vmatpush1.msra.mxu0 %v465
      %863 = vmatprep.subr.mxu0 0.0
      %864 = vmatpush1.msra.mxu0 %v466
      %865 = vmatprep.subr.mxu0 0.0
      %866 = vmatpush1.msra.mxu0 %v467
      %867 = vmatprep.subr.mxu0 0.0
      %868 = vmatpush1.msra.mxu0 %v468
      %869 = vmatprep.subr.mxu0 0.0
      %870 = vmatpush1.msra.mxu0 %v469
      %871 = vmatprep.subr.mxu0 0.0
      %872 = vmatpush1.msra.mxu0 %v470
      %873 = vmatprep.subr.mxu0 0.0
      %874 = vmatpush1.msra.mxu0 %v471
      %875 = vmatprep.subr.mxu0 0.0
      %876 = vmatpush1.msra.mxu0 %v472
      %877 = vmatprep.subr.mxu0 0.0
      %878 = vmatpush1.msra.mxu0 %v473
      %879 = vmatprep.subr.mxu0 0.0
      %880 = vmatpush1.msra.mxu0 %v474
      %881 = vmatprep.subr.mxu0 0.0
      %882 = vmatpush1.msra.mxu0 %v475
      %883 = vmatprep.mubr.f32.mxu0 %v517
      %884 = vmatmul.mubr.f32.gmra.mrb[0].mxu0 %v516
      %v885 = vpop.f32.mrb[0].mxu0
      %v886 = vadd.f32 %v781, %v885
      %v887 = vpop.f32.mrb[0].mxu0
      %888 = vmatprep.mubr.f32.mxu0 %v526
      %889 = vmatmul.mubr.f32.gmra.mrb[0].mxu0 %v525
      %v890 = vpop.f32.mrb[0].mxu0
      %v891 = vadd.f32 %v786, %v890
      %v892 = vpop.f32.mrb[0].mxu0
      %893 = vmatprep.mubr.f32.mxu0 %v535
      %894 = vmatmul.mubr.f32.gmra.mrb[0].mxu0 %v534
      %v895 = vpop.f32.mrb[0].mxu0
      %v896 = vadd.f32 %v791, %v895
      %v897 = vpop.f32.mrb[0].mxu0
      %898 = vmatprep.mubr.f32.mxu0 %v544
      %899 = vmatmul.mubr.f32.gmra.mrb[0].mxu0 %v543
      %v900 = vpop.f32.mrb[0].mxu0
      %v901 = vadd.f32 %v796, %v900
      %v902 = vpop.f32.mrb[0].mxu0
      %903 = vmatprep.mubr.f32.mxu0 %v553
      %904 = vmatmul.mubr.f32.gmra.mrb[0].mxu0 %v552
      %v905 = vpop.f32.mrb[0].mxu0
      %v906 = vadd.f32 %v801, %v905
      %v907 = vpop.f32.mrb[0].mxu0
      %908 = vmatprep.mubr.f32.mxu0 %v562
      %909 = vmatmul.mubr.f32.gmra.mrb[0].mxu0 %v561
      %v910 = vpop.f32.mrb[0].mxu0
      %v911 = vadd.f32 %v806, %v910
      %v912 = vpop.f32.mrb[0].mxu0
      %913 = vmatprep.mubr.f32.mxu0 %v571
      %914 = vmatmul.mubr.f32.gmra.mrb[0].mxu0 %v570
      %v915 = vpop.f32.mrb[0].mxu0
      %v916 = vadd.f32 %v811, %v915
      %v917 = vpop.f32.mrb[0].mxu0
      %918 = vmatprep.mubr.f32.mxu0 %v580
      %919 = vmatmul.mubr.f32.gmra.mrb[0].mxu0 %v579
      %v920 = vpop.f32.mrb[0].mxu0
      %v921 = vadd.f32 %v816, %v920
      %v922 = vpop.f32.mrb[0].mxu0
      %923 = vdwg.mxu0
      %924 = vmatprep.subr.mxu0 0.0
      %925 = vmatpush1.msra.mxu0 %v476
      %926 = vmatprep.subr.mxu0 0.0
      %927 = vmatpush1.msra.mxu0 %v477
      %928 = vmatprep.subr.mxu0 0.0
      %929 = vmatpush1.msra.mxu0 %v478
      %930 = vmatprep.subr.mxu0 0.0
      %931 = vmatpush1.msra.mxu0 %v479
      %932 = vmatprep.subr.mxu0 0.0
      %933 = vmatpush1.msra.mxu0 %v480
      %934 = vmatprep.subr.mxu0 0.0
      %935 = vmatpush1.msra.mxu0 %v481
      %936 = vmatprep.subr.mxu0 0.0
      %937 = vmatpush1.msra.mxu0 %v482
      %938 = vmatprep.subr.mxu0 0.0
      %939 = vmatpush1.msra.mxu0 %v483
      %940 = vmatprep.subr.mxu0 0.0
      %941 = vmatpush1.msra.mxu0 %v484
      %942 = vmatprep.subr.mxu0 0.0
      %943 = vmatpush1.msra.mxu0 %v485
      %944 = vmatprep.subr.mxu0 0.0
      %945 = vmatpush1.msra.mxu0 %v486
      %946 = vmatprep.subr.mxu0 0.0
      %947 = vmatpush1.msra.mxu0 %v487
      %948 = vmatprep.subr.mxu0 0.0
      %949 = vmatpush1.msra.mxu0 %v488
      %950 = vmatprep.subr.mxu0 0.0
      %951 = vmatpush1.msra.mxu0 %v489
      %952 = vmatprep.subr.mxu0 0.0
      %953 = vmatpush1.msra.mxu0 %v490
      %954 = vmatprep.subr.mxu0 0.0
      %955 = vmatpush1.msra.mxu0 %v491
      %956 = vmatprep.subr.mxu0 0.0
      %957 = vmatpush1.msra.mxu0 %v492
      %958 = vmatprep.subr.mxu0 0.0
      %959 = vmatpush1.msra.mxu0 %v493
      %960 = vmatprep.subr.mxu0 0.0
      %961 = vmatpush1.msra.mxu0 %v494
      %962 = vmatprep.subr.mxu0 0.0
      %963 = vmatpush1.msra.mxu0 %v495
      %964 = vmatprep.subr.mxu0 0.0
      %965 = vmatpush1.msra.mxu0 %v496
      %966 = vmatprep.subr.mxu0 0.0
      %967 = vmatpush1.msra.mxu0 %v497
      %968 = vmatprep.subr.mxu0 0.0
      %969 = vmatpush1.msra.mxu0 %v498
      %970 = vmatprep.subr.mxu0 0.0
      %971 = vmatpush1.msra.mxu0 %v499
      %972 = vmatprep.subr.mxu0 0.0
      %973 = vmatpush1.msra.mxu0 %v500
      %974 = vmatprep.subr.mxu0 0.0
      %975 = vmatpush1.msra.mxu0 %v501
      %976 = vmatprep.subr.mxu0 0.0
      %977 = vmatpush1.msra.mxu0 %v502
      %978 = vmatprep.subr.mxu0 0.0
      %979 = vmatpush1.msra.mxu0 %v503
      %980 = vmatprep.subr.mxu0 0.0
      %981 = vmatpush1.msra.mxu0 %v504
      %982 = vmatprep.subr.mxu0 0.0
      %983 = vmatpush1.msra.mxu0 %v505
      %984 = vmatprep.subr.mxu0 0.0
      %985 = vmatpush1.msra.mxu0 %v506
      %986 = vmatprep.subr.mxu0 0.0
      %987 = vmatpush1.msra.mxu0 %v507
      %988 = vmatprep.mubr.f32.mxu0 %v519
      %989 = vmatmul.mubr.f32.gmra.mrb[0].mxu0 %v518
      %v990 = vpop.f32.mrb[0].mxu0
      %v991 = vadd.f32 %v886, %v990
      %v992 = vpop.f32.mrb[0].mxu0
      %993 = vmatprep.mubr.f32.mxu0 %v528
      %994 = vmatmul.mubr.f32.gmra.mrb[0].mxu0 %v527
      %v995 = vpop.f32.mrb[0].mxu0
      %v996 = vadd.f32 %v891, %v995
      %v997 = vpop.f32.mrb[0].mxu0
      %998 = vmatprep.mubr.f32.mxu0 %v537
      %999 = vmatmul.mubr.f32.gmra.mrb[0].mxu0 %v536
      %v1000 = vpop.f32.mrb[0].mxu0
      %v1001 = vadd.f32 %v896, %v1000
      %v1002 = vpop.f32.mrb[0].mxu0
      %1003 = vmatprep.mubr.f32.mxu0 %v546
      %1004 = vmatmul.mubr.f32.gmra.mrb[0].mxu0 %v545
      %v1005 = vpop.f32.mrb[0].mxu0
      %v1006 = vadd.f32 %v901, %v1005
      %v1007 = vpop.f32.mrb[0].mxu0
      %1008 = vmatprep.mubr.f32.mxu0 %v555
      %1009 = vmatmul.mubr.f32.gmra.mrb[0].mxu0 %v554
      %v1010 = vpop.f32.mrb[0].mxu0
      %v1011 = vadd.f32 %v906, %v1010
      %v1012 = vpop.f32.mrb[0].mxu0
      %1013 = vmatprep.mubr.f32.mxu0 %v564
      %1014 = vmatmul.mubr.f32.gmra.mrb[0].mxu0 %v563
      %v1015 = vpop.f32.mrb[0].mxu0
      %v1016 = vadd.f32 %v911, %v1015
      %v1017 = vpop.f32.mrb[0].mxu0
      %1018 = vmatprep.mubr.f32.mxu0 %v573
      %1019 = vmatmul.mubr.f32.gmra.mrb[0].mxu0 %v572
      %v1020 = vpop.f32.mrb[0].mxu0
      %v1021 = vadd.f32 %v916, %v1020
      %v1022 = vpop.f32.mrb[0].mxu0
      %1023 = vmatprep.mubr.f32.mxu0 %v582
      %1024 = vmatmul.mubr.f32.gmra.mrb[0].mxu0 %v581
      %v1025 = vpop.f32.mrb[0].mxu0
      %v1026 = vadd.f32 %v921, %v1025
      %v1027 = vpop.f32.mrb[0].mxu0
      %1028 = vdwg.mxu0
      %1029 = vmatprep.subr.mxu0 0.0
      %1030 = vmatpush1.msra.mxu0 %v508
      %1031 = vmatprep.subr.mxu0 0.0
      %1032 = vmatpush1.msra.mxu0 %v509
      %1033 = vmatprep.subr.mxu0 0.0
      %1034 = vmatpush1.msra.mxu0 %v510
      %1035 = vmatprep.subr.mxu0 0.0
      %1036 = vmatpush1.msra.mxu0 %v511
      %1037 = vmatprep.subr.mxu0 0.0
      %1038 = vmatpush1.msra.mxu0 0.0
      %1039 = vmatprep.subr.mxu0 0.0
      %1040 = vmatpush1.msra.mxu0 0.0
      %1041 = vmatprep.subr.mxu0 0.0
      %1042 = vmatpush1.msra.mxu0 0.0
      %1043 = vmatprep.subr.mxu0 0.0
      %1044 = vmatpush1.msra.mxu0 0.0
      %1045 = vmatprep.subr.mxu0 0.0
      %1046 = vmatpush1.msra.mxu0 0.0
      %1047 = vmatprep.subr.mxu0 0.0
      %1048 = vmatpush1.msra.mxu0 0.0
      %1049 = vmatprep.subr.mxu0 0.0
      %1050 = vmatpush1.msra.mxu0 0.0
      %1051 = vmatprep.subr.mxu0 0.0
      %1052 = vmatpush1.msra.mxu0 0.0
      %1053 = vmatprep.subr.mxu0 0.0
      %1054 = vmatpush1.msra.mxu0 0.0
      %1055 = vmatprep.subr.mxu0 0.0
      %1056 = vmatpush1.msra.mxu0 0.0
      %1057 = vmatprep.subr.mxu0 0.0
      %1058 = vmatpush1.msra.mxu0 0.0
      %1059 = vmatprep.subr.mxu0 0.0
      %1060 = vmatpush1.msra.mxu0 0.0
      %1061 = vmatprep.subr.mxu0 0.0
      %1062 = vmatpush1.msra.mxu0 0.0
      %1063 = vmatprep.subr.mxu0 0.0
      %1064 = vmatpush1.msra.mxu0 0.0
      %1065 = vmatprep.subr.mxu0 0.0
      %1066 = vmatpush1.msra.mxu0 0.0
      %1067 = vmatprep.subr.mxu0 0.0
      %1068 = vmatpush1.msra.mxu0 0.0
      %1069 = vmatprep.subr.mxu0 0.0
      %1070 = vmatpush1.msra.mxu0 0.0
      %1071 = vmatprep.subr.mxu0 0.0
      %1072 = vmatpush1.msra.mxu0 0.0
      %1073 = vmatprep.subr.mxu0 0.0
      %1074 = vmatpush1.msra.mxu0 0.0
      %1075 = vmatprep.subr.mxu0 0.0
      %1076 = vmatpush1.msra.mxu0 0.0
      %1077 = vmatprep.subr.mxu0 0.0
      %1078 = vmatpush1.msra.mxu0 0.0
      %1079 = vmatprep.subr.mxu0 0.0
      %1080 = vmatpush1.msra.mxu0 0.0
      %1081 = vmatprep.subr.mxu0 0.0
      %1082 = vmatpush1.msra.mxu0 0.0
      %1083 = vmatprep.subr.mxu0 0.0
      %1084 = vmatpush1.msra.mxu0 0.0
      %1085 = vmatprep.subr.mxu0 0.0
      %1086 = vmatpush1.msra.mxu0 0.0
      %1087 = vmatprep.subr.mxu0 0.0
      %1088 = vmatpush1.msra.mxu0 0.0
      %1089 = vmatprep.subr.mxu0 0.0
      %1090 = vmatpush1.msra.mxu0 0.0
      %1091 = vmatprep.subr.mxu0 0.0
      %1092 = vmatpush1.msra.mxu0 0.0
      %1093 = vmatprep.mubr.f32.mxu0 0.0
      %1094 = vmatmul.mubr.f32.gmra.mrb[0].mxu0 %v586
      %v1095 = vpop.f32.mrb[0].mxu0
      %v1096 = vadd.f32 %v991, %v1095
      %v1097 = vpop.f32.mrb[0].mxu0
      %1098 = vmatprep.mubr.f32.mxu0 0.0
      %1099 = vmatmul.mubr.f32.gmra.mrb[0].mxu0 %v589
      %v1100 = vpop.f32.mrb[0].mxu0
      %v1101 = vadd.f32 %v996, %v1100
      %v1102 = vpop.f32.mrb[0].mxu0
      %1103 = vmatprep.mubr.f32.mxu0 0.0
      %1104 = vmatmul.mubr.f32.gmra.mrb[0].mxu0 %v592
      %v1105 = vpop.f32.mrb[0].mxu0
      %v1106 = vadd.f32 %v1001, %v1105
      %v1107 = vpop.f32.mrb[0].mxu0
      %1108 = vmatprep.mubr.f32.mxu0 0.0
      %1109 = vmatmul.mubr.f32.gmra.mrb[0].mxu0 %v595
      %v1110 = vpop.f32.mrb[0].mxu0
      %v1111 = vadd.f32 %v1006, %v1110
      %v1112 = vpop.f32.mrb[0].mxu0
      %1113 = vmatprep.mubr.f32.mxu0 0.0
      %1114 = vmatmul.mubr.f32.gmra.mrb[0].mxu0 %v598
      %v1115 = vpop.f32.mrb[0].mxu0
      %v1116 = vadd.f32 %v1011, %v1115
      %v1117 = vpop.f32.mrb[0].mxu0
      %1118 = vmatprep.mubr.f32.mxu0 0.0
      %1119 = vmatmul.mubr.f32.gmra.mrb[0].mxu0 %v601
      %v1120 = vpop.f32.mrb[0].mxu0
      %v1121 = vadd.f32 %v1016, %v1120
      %v1122 = vpop.f32.mrb[0].mxu0
      %1123 = vmatprep.mubr.f32.mxu0 0.0
      %1124 = vmatmul.mubr.f32.gmra.mrb[0].mxu0 %v604
      %v1125 = vpop.f32.mrb[0].mxu0
      %v1126 = vadd.f32 %v1021, %v1125
      %v1127 = vpop.f32.mrb[0].mxu0
      %1128 = vmatprep.mubr.f32.mxu0 0.0
      %1129 = vmatmul.mubr.f32.gmra.mrb[0].mxu0 %v607
      %v1130 = vpop.f32.mrb[0].mxu0
      %v1131 = vadd.f32 %v1026, %v1130
      %v1132 = vpop.f32.mrb[0].mxu0
      %1133 = vdwg.mxu0
      %vm1134 = vcmask 400384
      %v1135 = vsel %vm1134, %v1096, 0.0
      %1136 = vadd.xlane.f32.xlu0 %v1135
      %v1137 = vpop.xlane.xlu0 %1136
      %v1138 = vsel %vm1134, %v1101, 0.0
      %1139 = vadd.xlane.f32.xlu0 %v1138
      %v1140 = vpop.xlane.xlu0 %1139
      %v1141 = vsel %vm1134, %v1106, 0.0
      %1142 = vadd.xlane.f32.xlu0 %v1141
      %v1143 = vpop.xlane.xlu0 %1142
      %v1144 = vsel %vm1134, %v1111, 0.0
      %1145 = vadd.xlane.f32.xlu0 %v1144
      %v1146 = vpop.xlane.xlu0 %1145
      %v1147 = vsel %vm1134, %v1116, 0.0
      %1148 = vadd.xlane.f32.xlu0 %v1147
      %v1149 = vpop.xlane.xlu0 %1148
      %v1150 = vsel %vm1134, %v1121, 0.0
      %1151 = vadd.xlane.f32.xlu0 %v1150
      %v1152 = vpop.xlane.xlu0 %1151
      %v1153 = vsel %vm1134, %v1126, 0.0
      %1154 = vadd.xlane.f32.xlu0 %v1153
      %v1155 = vpop.xlane.xlu0 %1154
      %v1156 = vsel %vm1134, %v1131, 0.0
      %1157 = vadd.xlane.f32.xlu0 %v1156
      %v1158 = vpop.xlane.xlu0 %1157
      %v1159 = vmul.f32 %v1137, 0.020408163
      %v1160 = vmul.f32 %v1140, 0.020408163
      %v1161 = vmul.f32 %v1143, 0.020408163
      %v1162 = vmul.f32 %v1146, 0.020408163
      %v1163 = vmul.f32 %v1149, 0.020408163
      %v1164 = vmul.f32 %v1152, 0.020408163
      %v1165 = vmul.f32 %v1155, 0.020408163
      %v1166 = vmul.f32 %v1158, 0.020408163
      %v1167 = vmul.f32 %v1096, %v1096
      %v1168 = vmul.f32 %v1101, %v1101
      %v1169 = vmul.f32 %v1106, %v1106
      %v1170 = vmul.f32 %v1111, %v1111
      %v1171 = vmul.f32 %v1116, %v1116
      %v1172 = vmul.f32 %v1121, %v1121
      %v1173 = vmul.f32 %v1126, %v1126
      %v1174 = vmul.f32 %v1131, %v1131
      %v1175 = vsel %vm1134, %v1167, 0.0
      %1176 = vadd.xlane.f32.xlu0 %v1175
      %v1177 = vpop.xlane.xlu0 %1176
      %v1178 = vsel %vm1134, %v1168, 0.0
      %1179 = vadd.xlane.f32.xlu0 %v1178
      %v1180 = vpop.xlane.xlu0 %1179
      %v1181 = vsel %vm1134, %v1169, 0.0
      %1182 = vadd.xlane.f32.xlu0 %v1181
      %v1183 = vpop.xlane.xlu0 %1182
      %v1184 = vsel %vm1134, %v1170, 0.0
      %1185 = vadd.xlane.f32.xlu0 %v1184
      %v1186 = vpop.xlane.xlu0 %1185
      %v1187 = vsel %vm1134, %v1171, 0.0
      %1188 = vadd.xlane.f32.xlu0 %v1187
      %v1189 = vpop.xlane.xlu0 %1188
      %v1190 = vsel %vm1134, %v1172, 0.0
      %1191 = vadd.xlane.f32.xlu0 %v1190
      %v1192 = vpop.xlane.xlu0 %1191
      %v1193 = vsel %vm1134, %v1173, 0.0
      %1194 = vadd.xlane.f32.xlu0 %v1193
      %v1195 = vpop.xlane.xlu0 %1194
      %v1196 = vsel %vm1134, %v1174, 0.0
      %1197 = vadd.xlane.f32.xlu0 %v1196
      %v1198 = vpop.xlane.xlu0 %1197
      %v1199 = vmul.f32 %v1177, 0.020408163
      %v1200 = vmul.f32 %v1180, 0.020408163
      %v1201 = vmul.f32 %v1183, 0.020408163
      %v1202 = vmul.f32 %v1186, 0.020408163
      %v1203 = vmul.f32 %v1189, 0.020408163
      %v1204 = vmul.f32 %v1192, 0.020408163
      %v1205 = vmul.f32 %v1195, 0.020408163
      %v1206 = vmul.f32 %v1198, 0.020408163
      %v1207 = vmul.f32 %v1159, %v1159
      %v1208 = vmul.f32 %v1160, %v1160
      %v1209 = vmul.f32 %v1161, %v1161
      %v1210 = vmul.f32 %v1162, %v1162
      %v1211 = vmul.f32 %v1163, %v1163
      %v1212 = vmul.f32 %v1164, %v1164
      %v1213 = vmul.f32 %v1165, %v1165
      %v1214 = vmul.f32 %v1166, %v1166
      %v1215 = vsub.f32 %v1199, %v1207
      %v1216 = vsub.f32 %v1200, %v1208
      %v1217 = vsub.f32 %v1201, %v1209
      %v1218 = vsub.f32 %v1202, %v1210
      %v1219 = vsub.f32 %v1203, %v1211
      %v1220 = vsub.f32 %v1204, %v1212
      %v1221 = vsub.f32 %v1205, %v1213
      %v1222 = vsub.f32 %v1206, %v1214
      %v1223 = vmax.f32 %v1215, 0.0
      %v1224 = vmax.f32 %v1216, 0.0
      %v1225 = vmax.f32 %v1217, 0.0
      %v1226 = vmax.f32 %v1218, 0.0
      %v1227 = vmax.f32 %v1219, 0.0
      %v1228 = vmax.f32 %v1220, 0.0
      %v1229 = vmax.f32 %v1221, 0.0
      %v1230 = vmax.f32 %v1222, 0.0
      %v1231 = vld [vmem:[%s234] sm:$0xff]
      %v1232 = vld [vmem:[%s234 + $0x8] sm:$0xff]
      %v1233 = vld [vmem:[%s234 + $0x10] sm:$0xff]
      %v1234 = vld [vmem:[%s234 + $0x18] sm:$0xff]
      %v1235 = vld [vmem:[%s234 + $0x20] sm:$0xff]
      %v1236 = vld [vmem:[%s234 + $0x28] sm:$0xff]
      %v1237 = vld [vmem:[%s234 + $0x30] sm:$0xff]
      %v1238 = vld [vmem:[%s234 + $0x38] sm:$0xff]
      %v1239 = vadd.f32 %v1223, 1e-05
      %v1240 = vadd.f32 %v1224, 1e-05
      %v1241 = vadd.f32 %v1225, 1e-05
      %v1242 = vadd.f32 %v1226, 1e-05
      %v1243 = vadd.f32 %v1227, 1e-05
      %v1244 = vadd.f32 %v1228, 1e-05
      %v1245 = vadd.f32 %v1229, 1e-05
      %v1246 = vadd.f32 %v1230, 1e-05
      %v1247 = vrsqrt.pop %v1239
      %v1248 = vrsqrt.pop %v1240
      %v1249 = vrsqrt.pop %v1241
      %v1250 = vrsqrt.pop %v1242
      %v1251 = vrsqrt.pop %v1243
      %v1252 = vrsqrt.pop %v1244
      %v1253 = vrsqrt.pop %v1245
      %v1254 = vrsqrt.pop %v1246
      %v1255 = vmul.f32 %v1231, %v1247
      %v1256 = vmul.f32 %v1232, %v1248
      %v1257 = vmul.f32 %v1233, %v1249
      %v1258 = vmul.f32 %v1234, %v1250
      %v1259 = vmul.f32 %v1235, %v1251
      %v1260 = vmul.f32 %v1236, %v1252
      %v1261 = vmul.f32 %v1237, %v1253
      %v1262 = vmul.f32 %v1238, %v1254
      %v1263 = vld [vmem:[%s240] sm:$0xff]
      %v1264 = vld [vmem:[%s240 + $0x8] sm:$0xff]
      %v1265 = vld [vmem:[%s240 + $0x10] sm:$0xff]
      %v1266 = vld [vmem:[%s240 + $0x18] sm:$0xff]
      %v1267 = vld [vmem:[%s240 + $0x20] sm:$0xff]
      %v1268 = vld [vmem:[%s240 + $0x28] sm:$0xff]
      %v1269 = vld [vmem:[%s240 + $0x30] sm:$0xff]
      %v1270 = vld [vmem:[%s240 + $0x38] sm:$0xff]
      %v1271 = vmul.f32 %v1159, %v1255
      %v1272 = vmul.f32 %v1160, %v1256
      %v1273 = vmul.f32 %v1161, %v1257
      %v1274 = vmul.f32 %v1162, %v1258
      %v1275 = vmul.f32 %v1163, %v1259
      %v1276 = vmul.f32 %v1164, %v1260
      %v1277 = vmul.f32 %v1165, %v1261
      %v1278 = vmul.f32 %v1166, %v1262
      %v1279 = vsub.f32 %v1263, %v1271
      %v1280 = vsub.f32 %v1264, %v1272
      %v1281 = vsub.f32 %v1265, %v1273
      %v1282 = vsub.f32 %v1266, %v1274
      %v1283 = vsub.f32 %v1267, %v1275
      %v1284 = vsub.f32 %v1268, %v1276
      %v1285 = vsub.f32 %v1269, %v1277
      %v1286 = vsub.f32 %v1270, %v1278
      %1288 = vset.pattern.permute.xlu0 0
      %1289 = vperm.xlu0 %1288, %v1255
      %v1290 = vpop.permute.xlu0 %1289
      %1293 = vset.pattern.permute.xlu0 0
      %1294 = vperm.xlu0 %1293, %v1256
      %v1295 = vpop.permute.xlu0 %1294
      %1298 = vset.pattern.permute.xlu0 0
      %1299 = vperm.xlu0 %1298, %v1257
      %v1300 = vpop.permute.xlu0 %1299
      %1303 = vset.pattern.permute.xlu0 0
      %1304 = vperm.xlu0 %1303, %v1258
      %v1305 = vpop.permute.xlu0 %1304
      %1308 = vset.pattern.permute.xlu0 0
      %1309 = vperm.xlu0 %1308, %v1259
      %v1310 = vpop.permute.xlu0 %1309
      %1313 = vset.pattern.permute.xlu0 0
      %1314 = vperm.xlu0 %1313, %v1260
      %v1315 = vpop.permute.xlu0 %1314
      %1318 = vset.pattern.permute.xlu0 0
      %1319 = vperm.xlu0 %1318, %v1261
      %v1320 = vpop.permute.xlu0 %1319
      %1323 = vset.pattern.permute.xlu0 0
      %1324 = vperm.xlu0 %1323, %v1262
      %v1325 = vpop.permute.xlu0 %1324
      %v1327 = vmul.f32 %v1096, %v1290
      %v1328 = vmul.f32 %v1101, %v1295
      %v1329 = vmul.f32 %v1106, %v1300
      %v1330 = vmul.f32 %v1111, %v1305
      %v1331 = vmul.f32 %v1116, %v1310
      %v1332 = vmul.f32 %v1121, %v1315
      %v1333 = vmul.f32 %v1126, %v1320
      %v1334 = vmul.f32 %v1131, %v1325
      %1336 = vset.pattern.permute.xlu0 0
      %1337 = vperm.xlu0 %1336, %v1279
      %v1338 = vpop.permute.xlu0 %1337
      %1341 = vset.pattern.permute.xlu0 0
      %1342 = vperm.xlu0 %1341, %v1280
      %v1343 = vpop.permute.xlu0 %1342
      %1346 = vset.pattern.permute.xlu0 0
      %1347 = vperm.xlu0 %1346, %v1281
      %v1348 = vpop.permute.xlu0 %1347
      %1351 = vset.pattern.permute.xlu0 0
      %1352 = vperm.xlu0 %1351, %v1282
      %v1353 = vpop.permute.xlu0 %1352
      %1356 = vset.pattern.permute.xlu0 0
      %1357 = vperm.xlu0 %1356, %v1283
      %v1358 = vpop.permute.xlu0 %1357
      %1361 = vset.pattern.permute.xlu0 0
      %1362 = vperm.xlu0 %1361, %v1284
      %v1363 = vpop.permute.xlu0 %1362
      %1366 = vset.pattern.permute.xlu0 0
      %1367 = vperm.xlu0 %1366, %v1285
      %v1368 = vpop.permute.xlu0 %1367
      %1371 = vset.pattern.permute.xlu0 0
      %1372 = vperm.xlu0 %1371, %v1286
      %v1373 = vpop.permute.xlu0 %1372
      %v1375 = vadd.f32 %v1327, %v1338
      %v1376 = vadd.f32 %v1328, %v1343
      %v1377 = vadd.f32 %v1329, %v1348
      %v1378 = vadd.f32 %v1330, %v1353
      %v1379 = vadd.f32 %v1331, %v1358
      %v1380 = vadd.f32 %v1332, %v1363
      %v1381 = vadd.f32 %v1333, %v1368
      %v1382 = vadd.f32 %v1334, %v1373
      %1383 = vst.msk [vmem:[%s246] sm:$0xff] %vm1134, %v1375
      %1384 = vst.msk [vmem:[%s246 + $0x8] sm:$0xff] %vm1134, %v1376
      %1385 = vst.msk [vmem:[%s246 + $0x10] sm:$0xff] %vm1134, %v1377
      %1386 = vst.msk [vmem:[%s246 + $0x18] sm:$0xff] %vm1134, %v1378
      %1387 = vst.msk [vmem:[%s246 + $0x20] sm:$0xff] %vm1134, %v1379
      %1388 = vst.msk [vmem:[%s246 + $0x28] sm:$0xff] %vm1134, %v1380
      %1389 = vst.msk [vmem:[%s246 + $0x30] sm:$0xff] %vm1134, %v1381
      %1390 = vst.msk [vmem:[%s246 + $0x38] sm:$0xff] %vm1134, %v1382
      %s1391 = smul.u32 8, %s15
      %p1392 = scmp.lt.s32.totalorder %s1391, 15
      %s1393 = scalar_select %p1392, %s1391, 15
      %s1394 = smul.addr %s1393, 8
      %s1395 = scalar_lea.vmem %s4, %s1394
      // Predicated region
      $region37: #{tpu_custom_call.1} parent=35 // pred_check
        %p1396 = pneg %p132
      $region38: #{tpu_custom_call.1} parent=35 // pred_check_branch
        %1398 = sbr.rel (%p1396) target = $region40
      $region39: #{tpu_custom_call.1} parent=35 // pred_region
        %s1399 = smul.u32 8, %s15
      $region40: #{tpu_custom_call.1} parent=35 // pred_fallthru
        _
    $region36: #{tpu_custom_call.1} parent=5 // pred_fallthru
      _
    %p1400 = scmp.le.s32.totalorder 2, %s10
    // Predicated region
    $region41: #{tpu_custom_call.1} parent=5 // pred_check
      %p1401 = pneg %p1400
    $region42: #{tpu_custom_call.1} parent=5 // pred_check_branch
      %1403 = sbr.rel (%p1401) target = $region44
    $region43: #{tpu_custom_call.1} parent=5 // pred_region
      %s1404 = ssub.s32 %s10, 2
      // Predicated region
      $region45: #{tpu_custom_call.1} parent=43 // pred_check
        %p1405 = pneg %p138
      $region46: #{tpu_custom_call.1} parent=43 // pred_check_branch
        %1407 = sbr.rel (%p1405) target = $region48
      $region47: #{tpu_custom_call.1} parent=43 // pred_region
        %s1408 = smul.u32 8, %s16
        %p1409 = scmp.lt.s32.totalorder %s1408, 15
        %s1410 = scalar_select %p1409, %s1408, 15
        %s1411 = smul.addr %s1410, 8
        %s1412 = scalar_lea.vmem %s4, %s1411
      $region48: #{tpu_custom_call.1} parent=43 // pred_fallthru
        _
    $region44: #{tpu_custom_call.1} parent=5 // pred_fallthru
      _
  $region6: #{tpu_custom_call.1} parent=0 // loop_footer
    %s14 = sadd.s32 1, %s10
  $region7: #{tpu_custom_call.1} parent=0 // loop_footer_branch
    %9 = sbr.rel target = $region3
  $region8: #{tpu_custom_call.1} parent=0 // loop_exit
    _

</llo_original>
